<compile_context>
chip_gen: v7x
topology: tpu7x:2x2x1
jax: 0.10.0
libtpu: 0.0.40
codegen_flags: <defaults>
</compile_context>

<pallas_src>
import functools

import jax
import jax.numpy as jnp
from jax.experimental import pallas as pl
from jax.experimental.pallas import tpu as pltpu


# --------------------------------------------------------------------------- kernel

def _mlp_kernel(*refs, num_hidden_layers, compute_dtype):
    """Fused MLP forward for one batch-on-lanes tile.

    refs = (xT_ref,                                   # [d0, tm]   compute_dtype
            w0_ref, b0_ref, ..., w{L-1}_ref, b{L-1}_ref,  # hidden Linear+ReLU params
            wp_ref, bp_ref,                           # predictor Linear -> 1
            o_ref)                                    # [1, tm]    float32
    Weights are stored as [d_out, d_in] (MXU LHS); biases as [d_out, 1] columns.
    """
    xT_ref = refs[0]
    o_ref = refs[-1]
    param_refs = refs[1:-1]

    h = xT_ref[...]                                    # [d0, tm], compute_dtype

    # Hidden layers: h <- relu(W @ h + b). bf16 MXU operands, f32 accumulation.
    for l in range(num_hidden_layers):
        w = param_refs[2 * l][...]                     # [d_out, d_in], compute_dtype
        b = param_refs[2 * l + 1][...]                 # [d_out, 1],    float32
        h = jnp.dot(w, h, preferred_element_type=jnp.float32) + b
        h = jnp.maximum(h, 0.0)
        if l + 1 < num_hidden_layers:
            h = h.astype(compute_dtype)                # keep last hidden act in f32

    # Predictor: [d_last, tm] -> [1, tm]. Single output row would waste the MXU, so
    # do a VPU multiply + cross-sublane (XLU) reduction; result is lane-dense.
    wp = param_refs[2 * num_hidden_layers][...]        # [d_last, 1], float32
    bp = param_refs[2 * num_hidden_layers + 1][...]    # [1, 1],      float32
    out = jnp.sum(h * wp, axis=0, keepdims=True) + bp  # [1, tm], f32
    o_ref[...] = out.astype(o_ref.dtype)


# --------------------------------------------------------------------------- helpers

def _round_up(n, m):
    return ((n + m - 1) // m) * m


def _block_bytes(rows, cols, dtype):
    """Bytes one VMEM block really occupies (sublane + 128-lane padding)."""
    item = jnp.dtype(dtype).itemsize
    sublane = 8 * max(1, 4 // item)            # 8 rows for f32, 16 for bf16 packing
    return _round_up(max(rows, 1), sublane) * _round_up(max(cols, 1), 128) * item


def _clamp_tile_for_vmem(tm, d0, d_max, param_blocks, compute_dtype,
                         budget_bytes=24 << 20):
    """Shrink the lane-tile until streamed double buffers + live activations +
    resident params fit a conservative budget (safe for v7x's 32 MiB scoped VMEM)."""
    param_bytes = 2 * sum(_block_bytes(r, c, dt) for (r, c, dt) in param_blocks)

    def tile_bytes(t):
        return (2 * _block_bytes(d0, t, compute_dtype)       # x^T tile, double-buffered
                + 2 * _block_bytes(1, t, jnp.float32)        # out row, double-buffered
                + 3 * _block_bytes(d_max, t, jnp.float32)    # live f32 activations/temps
                + _block_bytes(d_max, t, compute_dtype))     # bf16 activation re-cast

    while tm > 128 and param_bytes + tile_bytes(tm) > budget_bytes:
        tm = _round_up(tm // 2, 128)
    return max(tm, 128)


# --------------------------------------------------------------------------- wrapper

def kinematic_corrector_forward(x, weights, biases, pred_w, pred_b, *,
                                batch_tile=8192, compute_dtype=jnp.bfloat16):
    """Run the fused MLP Pallas kernel.

    x:        [B, dims[0]]  float32
    weights:  list of [dims[i], dims[i+1]]  (transposed vs. PyTorch's W)
    biases:   list of [1, dims[i+1]]        float32
    pred_w:   [dims[-1], 1]                 float32
    pred_b:   [1, 1]                        float32
    returns:  [B, 1] float32
    """
    num_hidden_layers = len(weights)
    B, d0 = x.shape
    d_outs = [w.shape[1] for w in weights]
    d_last = d_outs[-1] if num_hidden_layers else d0
    d_max = max([d0] + d_outs)

    # Resident-param block shapes (for the VMEM model).
    param_blocks = []
    for w in weights:
        param_blocks.append((w.shape[1], w.shape[0], compute_dtype))  # W^T  [d_out, d_in]
        param_blocks.append((w.shape[1], 1, jnp.float32))             # bias [d_out, 1]
    param_blocks.append((d_last, 1, jnp.float32))                     # pred_w column
    param_blocks.append((1, 1, jnp.float32))                          # pred_b

    # Lane-tile over the batch axis: multiple of 128.
    tm = _round_up(min(batch_tile, max(B, 128)), 128)
    # v7x: guarantee >= 2 grid tiles when the batch allows, so both TCs get work.
    if B > 128:
        half = _round_up(-(-_round_up(B, 128) // 2), 128)
        tm = min(tm, half)
    tm = _clamp_tile_for_vmem(tm, d0, d_max, param_blocks, compute_dtype)

    b_pad = _round_up(B, tm)
    num_tiles = b_pad // tm

    # Batch-on-lanes: transpose + cast the only streamed operand once in the wrapper.
    # (In production the producer should emit [d0, B] directly; padding is <= tm-1 cols.)
    xT = x.T.astype(compute_dtype)
    if b_pad != B:
        xT = jnp.pad(xT, ((0, 0), (0, b_pad - B)))

    w_lhs = [w.T.astype(compute_dtype) for w in weights]               # [d_out, d_in]
    b_col = [b.reshape(-1, 1).astype(jnp.float32) for b in biases]     # [d_out, 1]
    wp_col = pred_w.reshape(d_last, 1).astype(jnp.float32)             # [d_last, 1]
    bp = pred_b.reshape(1, 1).astype(jnp.float32)                      # [1, 1]

    operands = [xT]
    in_specs = [pl.BlockSpec((d0, tm), lambda i: (0, i))]              # streamed per tile
    for w, b in zip(w_lhs, b_col):
        operands.extend([w, b])
        in_specs.append(pl.BlockSpec(w.shape, lambda i: (0, 0)))       # VMEM-resident
        in_specs.append(pl.BlockSpec(b.shape, lambda i: (0, 0)))
    operands.extend([wp_col, bp])
    in_specs.append(pl.BlockSpec(wp_col.shape, lambda i: (0, 0)))
    in_specs.append(pl.BlockSpec((1, 1), lambda i: (0, 0)))

    out_spec = pl.BlockSpec((1, tm), lambda i: (0, i))                 # lane-dense row

    kernel = functools.partial(_mlp_kernel,
                               num_hidden_layers=num_hidden_layers,
                               compute_dtype=compute_dtype)

    out_row = pl.pallas_call(
        kernel,
        out_shape=jax.ShapeDtypeStruct((1, b_pad), jnp.float32),
        grid_spec=pltpu.PrefetchScalarGridSpec(
            num_scalar_prefetch=0,
            grid=(num_tiles,),
            in_specs=in_specs,
            out_specs=out_spec,
        ),
        compiler_params=pltpu.CompilerParams(
            dimension_semantics=("parallel",),   # independent batch tiles -> 2 TCs on v7x
            vmem_limit_bytes=32 << 20,
        ),
    )(*operands)

    return out_row[0, :B].reshape(B, 1)


# --------------------------------------------------------------------------- reference

def init_params(key, dims):
    """Deterministic init mimicking PyTorch nn.Linear default
    (uniform in [-1/sqrt(fan_in), 1/sqrt(fan_in)])."""
    weights, biases = [], []
    for d in range(len(dims) - 1):
        fan_in, fan_out = dims[d], dims[d + 1]
        key, kw, kb = jax.random.split(key, 3)
        bound = 1.0 / jnp.sqrt(jnp.float32(fan_in))
        weights.append(jax.random.uniform(kw, (fan_in, fan_out), jnp.float32, -bound, bound))
        biases.append(jax.random.uniform(kb, (1, fan_out), jnp.float32, -bound, bound))
    fan_in = dims[-1]
    key, kw, kb = jax.random.split(key, 3)
    bound = 1.0 / jnp.sqrt(jnp.float32(fan_in))
    pred_w = jax.random.uniform(kw, (fan_in, 1), jnp.float32, -bound, bound)
    pred_b = jax.random.uniform(kb, (1, 1), jnp.float32, -bound, bound)
    return weights, biases, pred_w, pred_b


def reference_forward(x, weights, biases, pred_w, pred_b):
    h = x
    for w, b in zip(weights, biases):
        h = jnp.maximum(h @ w + b, 0.0)
    return h @ pred_w + pred_b


if __name__ == "__main__":
    # params = {'dims': [16, 32, 32], 'activation': nn.ReLU}
    dims = [16, 32, 32]

    key = jax.random.PRNGKey(0)
    key, kp = jax.random.split(key)
    weights, biases, pred_w, pred_b = init_params(kp, dims)

    # Case 1: tiny batch (single grid tile), exact f32 compute path.
    key, kx = jax.random.split(key)
    x_small = jax.random.normal(kx, (8, dims[0]), jnp.float32)
    out_f32 = kinematic_corrector_forward(x_small, weights, biases, pred_w, pred_b,
                                          compute_dtype=jnp.float32)
    out_f32 = jax.block_until_ready(out_f32)
    ref_small = reference_forward(x_small, weights, biases, pred_w, pred_b)
    assert out_f32.shape == (8, 1), out_f32.shape
    assert jnp.allclose(out_f32, ref_small, atol=1e-5, rtol=1e-5)

    # Case 2: multi-tile grid (272 rows -> 2 tiles of 256) with bf16 MXU operands.
    key, kx2 = jax.random.split(key)
    x_big = jax.random.normal(kx2, (272, dims[0]), jnp.float32)
    out_bf16 = kinematic_corrector_forward(x_big, weights, biases, pred_w, pred_b,
                                           compute_dtype=jnp.bfloat16)
    out_bf16 = jax.block_until_ready(out_bf16)
    ref_big = reference_forward(x_big, weights, biases, pred_w, pred_b)
    assert out_bf16.shape == (272, 1), out_bf16.shape
    # bf16 operands / f32 accumulation -> loosened tolerance.
    assert jnp.allclose(out_bf16, ref_big, atol=3e-2, rtol=3e-2)

    print("KERNEL_OK")
</pallas_src>

<mosaic_0001>
module attributes {stable_mosaic.version = 11 : i64} {
  func.func @_mlp_kernel(%arg0: i32, %arg1: memref<16x128xf32, #tpu.memory_space<vmem>>, %arg2: memref<32x16xf32, #tpu.memory_space<vmem>>, %arg3: memref<32x1xf32, #tpu.memory_space<vmem>>, %arg4: memref<32x32xf32, #tpu.memory_space<vmem>>, %arg5: memref<32x1xf32, #tpu.memory_space<vmem>>, %arg6: memref<32x1xf32, #tpu.memory_space<vmem>>, %arg7: memref<1x1xf32, #tpu.memory_space<vmem>>, %arg8: memref<1x128xf32, #tpu.memory_space<vmem>>) attributes {dimension_semantics = [#tpu.dimension_semantics<parallel>], iteration_bounds = array<i64: 1>, scalar_prefetch = 0 : i64, scratch_operands = 0 : i64, tpu.core_type = #tpu.core_type<tc>, window_params = [{transform_indices = @transform_0, window_bounds = array<i64: 16, 128>}, {pipeline_mode = #tpu.pipeline_mode<synchronous>, transform_indices = @transform_1, window_bounds = array<i64: 32, 16>}, {pipeline_mode = #tpu.pipeline_mode<synchronous>, transform_indices = @transform_2, window_bounds = array<i64: 32, 1>}, {pipeline_mode = #tpu.pipeline_mode<synchronous>, transform_indices = @transform_3, window_bounds = array<i64: 32, 32>}, {pipeline_mode = #tpu.pipeline_mode<synchronous>, transform_indices = @transform_4, window_bounds = array<i64: 32, 1>}, {pipeline_mode = #tpu.pipeline_mode<synchronous>, transform_indices = @transform_5, window_bounds = array<i64: 32, 1>}, {pipeline_mode = #tpu.pipeline_mode<synchronous>, transform_indices = @transform_6, window_bounds = array<i64: 1, 1>}, {transform_indices = @transform_7, window_bounds = array<i64: 1, 128>}]} {
    %c0 = arith.constant 0 : index
    %c0_0 = arith.constant 0 : index
    %0 = vector.load %arg1[%c0, %c0_0] : memref<16x128xf32, #tpu.memory_space<vmem>>, vector<16x128xf32>
    %c0_1 = arith.constant 0 : index
    %c0_2 = arith.constant 0 : index
    %1 = vector.load %arg2[%c0_1, %c0_2] : memref<32x16xf32, #tpu.memory_space<vmem>>, vector<32x16xf32>
    %c0_3 = arith.constant 0 : index
    %c0_4 = arith.constant 0 : index
    %2 = vector.load %arg3[%c0_3, %c0_4] : memref<32x1xf32, #tpu.memory_space<vmem>>, vector<32x1xf32>
    %cst = arith.constant dense<0.000000e+00> : vector<32x128xf32>
    %3 = tpu.matmul %1, %0, %cst {dimension_numbers = #tpu.dot_dimension_numbers<[1], [0], [0], [1], [0, 0, 1, 1], [], []>} : vector<32x16xf32>, vector<16x128xf32>, vector<32x128xf32> -> vector<32x128xf32>
    %4 = vector.broadcast %2 : vector<32x1xf32> to vector<32x128xf32>
    %5 = arith.addf %3, %4 : vector<32x128xf32>
    %cst_5 = arith.constant 0.000000e+00 : f32
    %6 = vector.broadcast %cst_5 : f32 to vector<32x128xf32>
    %7 = arith.maximumf %5, %6 : vector<32x128xf32>
    %c0_6 = arith.constant 0 : index
    %c0_7 = arith.constant 0 : index
    %8 = vector.load %arg4[%c0_6, %c0_7] : memref<32x32xf32, #tpu.memory_space<vmem>>, vector<32x32xf32>
    %c0_8 = arith.constant 0 : index
    %c0_9 = arith.constant 0 : index
    %9 = vector.load %arg5[%c0_8, %c0_9] : memref<32x1xf32, #tpu.memory_space<vmem>>, vector<32x1xf32>
    %cst_10 = arith.constant dense<0.000000e+00> : vector<32x128xf32>
    %10 = tpu.matmul %8, %7, %cst_10 {dimension_numbers = #tpu.dot_dimension_numbers<[1], [0], [0], [1], [0, 0, 1, 1], [], []>} : vector<32x32xf32>, vector<32x128xf32>, vector<32x128xf32> -> vector<32x128xf32>
    %11 = vector.broadcast %9 : vector<32x1xf32> to vector<32x128xf32>
    %12 = arith.addf %10, %11 : vector<32x128xf32>
    %cst_11 = arith.constant 0.000000e+00 : f32
    %13 = vector.broadcast %cst_11 : f32 to vector<32x128xf32>
    %14 = arith.maximumf %12, %13 : vector<32x128xf32>
    %c0_12 = arith.constant 0 : index
    %c0_13 = arith.constant 0 : index
    %15 = vector.load %arg6[%c0_12, %c0_13] : memref<32x1xf32, #tpu.memory_space<vmem>>, vector<32x1xf32>
    %c0_14 = arith.constant 0 : index
    %c0_15 = arith.constant 0 : index
    %16 = vector.load %arg7[%c0_14, %c0_15] : memref<1x1xf32, #tpu.memory_space<vmem>>, vector<1x1xf32>
    %17 = vector.broadcast %15 : vector<32x1xf32> to vector<32x128xf32>
    %18 = arith.mulf %14, %17 : vector<32x128xf32>
    %cst_16 = arith.constant dense<0.000000e+00> : vector<128xf32>
    %19 = vector.multi_reduction <add>, %18, %cst_16 [0] : vector<32x128xf32> to vector<128xf32>
    %20 = vector.shape_cast %19 : vector<128xf32> to vector<1x128xf32>
    %21 = vector.broadcast %16 : vector<1x1xf32> to vector<1x128xf32>
    %22 = arith.addf %20, %21 : vector<1x128xf32>
    %c0_17 = arith.constant 0 : index
    %c0_18 = arith.constant 0 : index
    %23 = vector.load %arg8[%c0_17, %c0_18] : memref<1x128xf32, #tpu.memory_space<vmem>>, vector<1x128xf32>
    tpu.vector_store %arg8[%c0_17, %c0_18], %22 {strides = array<i32>} : memref<1x128xf32, #tpu.memory_space<vmem>>, vector<1x128xf32>,
    return
  }
  func.func @transform_0(%arg0: i32) -> (i32, i32) {
    %c0_i32 = arith.constant 0 : i32
    %c0_i32_0 = arith.constant 0 : i32
    return %c0_i32, %arg0 : i32, i32
  }
  func.func @transform_1(%arg0: i32) -> (i32, i32) {
    %c0_i32 = arith.constant 0 : i32
    %c0_i32_0 = arith.constant 0 : i32
    %c0_i32_1 = arith.constant 0 : i32
    return %c0_i32, %c0_i32_0 : i32, i32
  }
  func.func @transform_2(%arg0: i32) -> (i32, i32) {
    %c0_i32 = arith.constant 0 : i32
    %c0_i32_0 = arith.constant 0 : i32
    %c0_i32_1 = arith.constant 0 : i32
    return %c0_i32, %c0_i32_0 : i32, i32
  }
  func.func @transform_3(%arg0: i32) -> (i32, i32) {
    %c0_i32 = arith.constant 0 : i32
    %c0_i32_0 = arith.constant 0 : i32
    %c0_i32_1 = arith.constant 0 : i32
    return %c0_i32, %c0_i32_0 : i32, i32
  }
  func.func @transform_4(%arg0: i32) -> (i32, i32) {
    %c0_i32 = arith.constant 0 : i32
    %c0_i32_0 = arith.constant 0 : i32
    %c0_i32_1 = arith.constant 0 : i32
    return %c0_i32, %c0_i32_0 : i32, i32
  }
  func.func @transform_5(%arg0: i32) -> (i32, i32) {
    %c0_i32 = arith.constant 0 : i32
    %c0_i32_0 = arith.constant 0 : i32
    %c0_i32_1 = arith.constant 0 : i32
    return %c0_i32, %c0_i32_0 : i32, i32
  }
  func.func @transform_6(%arg0: i32) -> (i32, i32) {
    %c0_i32 = arith.constant 0 : i32
    %c0_i32_0 = arith.constant 0 : i32
    %c0_i32_1 = arith.constant 0 : i32
    return %c0_i32, %c0_i32_0 : i32, i32
  }
  func.func @transform_7(%arg0: i32) -> (i32, i32) {
    %c0_i32 = arith.constant 0 : i32
    %c0_i32_0 = arith.constant 0 : i32
    return %c0_i32, %arg0 : i32, i32
  }
}

</mosaic_0001>

<llo_original>
// kernel: tpu_custom_call.1
$region0: #{tpu_custom_call.1}
  #allocation0 [shape = 'u32[]', space=smem, size = 0x4, offset = 0x4, fixed_abs, tag = 'smem constant byte address 0x4 - core index']
  #allocation1 [shape = 'u32[144,128]{1,0:T(1,128)}', space=vmem, size = 0x12000, scoped, tag = 'internal scratch']
  #allocation2 [shape = 'f32[1,1]{1,0:T(1,128)S(1)}', space=vmem, size = 0x200, scoped, tag = 'scoped memory for tpu_custom_call.1']
  %s0 = inlined_call_operand.vmem [shape: f32[16,128], index: 0, kind: input, shape index: {}]
  %s1 = inlined_call_operand.vmem [shape: f32[32,16], index: 1, kind: input, shape index: {}]
  %s2 = inlined_call_operand.vmem [shape: f32[32,1], index: 2, kind: input, shape index: {}]
  %s3 = inlined_call_operand.vmem [shape: f32[32,32], index: 3, kind: input, shape index: {}]
  %s4 = inlined_call_operand.vmem [shape: f32[32,1], index: 4, kind: input, shape index: {}]
  %s5 = inlined_call_operand.vmem [shape: f32[32,1], index: 5, kind: input, shape index: {}]
  %s6 = inlined_call_operand.<no memory space> [shape: f32[1,1], index: 6, kind: input, shape index: {}]
  %s7 = inlined_call_operand.hbm [shape: f32[1,128], index: 7, kind: output, shape index: {}]
  %s8 = sld [smem:[#allocation0]]
  $region38: #{tpu_custom_call.1} parent=0
    _
  %s10 = ssub.s32 1, %s8
  %s11 = scalar_select 0, %s10, %s8
  %v12 = vstv %s6
  %13 = vst [vmem:[#allocation2] sm:$0x1] %v12
  $region1: #{tpu_custom_call.1} parent=0
    #allocation3 [shape = 'u8[512]{0}', space=vmem, size = 0x400, scoped, tag = 'output window, operand 0, single buffered']
    #allocation4 [shape = 's32[1]{0}', space=sflag, size = 0x4, scoped, tag = 'scoped memory for tpu_custom_call.1']
    %14 = vsyncpa [#allocation4], 0
    // Predicated region
    $region2: #{tpu_custom_call.1} parent=1 // pred_check
      _
    $region3: #{tpu_custom_call.1} parent=1 // pred_check_branch
      %16 = sbr.rel (0) target = $region5
    $region4: #{tpu_custom_call.1} parent=1 // pred_region
      _
    $region5: #{tpu_custom_call.1} parent=1 // pred_fallthru
      _
    // Predicated region
    $region6: #{tpu_custom_call.1} parent=1 // pred_check
      _
    $region7: #{tpu_custom_call.1} parent=1 // pred_check_branch
      %18 = sbr.rel (0) target = $region9
    $region8: #{tpu_custom_call.1} parent=1 // pred_region
      _
    $region9: #{tpu_custom_call.1} parent=1 // pred_fallthru
      _
    // Predicated region
    $region10: #{tpu_custom_call.1} parent=1 // pred_check
      _
    $region11: #{tpu_custom_call.1} parent=1 // pred_check_branch
      %20 = sbr.rel (0) target = $region13
    $region12: #{tpu_custom_call.1} parent=1 // pred_region
      _
    $region13: #{tpu_custom_call.1} parent=1 // pred_fallthru
      _
    // Predicated region
    $region14: #{tpu_custom_call.1} parent=1 // pred_check
      _
    $region15: #{tpu_custom_call.1} parent=1 // pred_check_branch
      %22 = sbr.rel (0) target = $region17
    $region16: #{tpu_custom_call.1} parent=1 // pred_region
      _
    $region17: #{tpu_custom_call.1} parent=1 // pred_fallthru
      _
    // Predicated region
    $region18: #{tpu_custom_call.1} parent=1 // pred_check
      _
    $region19: #{tpu_custom_call.1} parent=1 // pred_check_branch
      %24 = sbr.rel (0) target = $region21
    $region20: #{tpu_custom_call.1} parent=1 // pred_region
      _
    $region21: #{tpu_custom_call.1} parent=1 // pred_fallthru
      _
    // Predicated region
    $region22: #{tpu_custom_call.1} parent=1 // pred_check
      _
    $region23: #{tpu_custom_call.1} parent=1 // pred_check_branch
      %26 = sbr.rel (0) target = $region25
    $region24: #{tpu_custom_call.1} parent=1 // pred_region
      _
    $region25: #{tpu_custom_call.1} parent=1 // pred_fallthru
      _
    // Predicated region
    $region26: #{tpu_custom_call.1} parent=1 // pred_check
      _
    $region27: #{tpu_custom_call.1} parent=1 // pred_check_branch
      %28 = sbr.rel (0) target = $region29
    $region28: #{tpu_custom_call.1} parent=1 // pred_region
      _
    $region29: #{tpu_custom_call.1} parent=1 // pred_fallthru
      _
    %v29 = vld [vmem:[%s0] sm:$0xff]
    %v30 = vld [vmem:[%s0 + $0x8] sm:$0xff]
    %v31 = vld [vmem:[%s1] sm:$0xff]
    %v32 = vld [vmem:[%s1 + $0x8] sm:$0xff]
    %v33 = vld [vmem:[%s1 + $0x10] sm:$0xff]
    %v34 = vld [vmem:[%s1 + $0x18] sm:$0xff]
    %v35 = vld [vmem:[%s2] sm:$0xff]
    %v36 = vld [vmem:[%s2 + $0x8] sm:$0xff]
    %v37 = vld [vmem:[%s2 + $0x10] sm:$0xff]
    %v38 = vld [vmem:[%s2 + $0x18] sm:$0xff]
    %40 = vset.pattern.permute.xlu0 0
    %41 = vperm.xlu0 %40, %v35
    %v42 = vpop.permute.xlu0 %41
    %45 = vset.pattern.permute.xlu0 0
    %46 = vperm.xlu0 %45, %v36
    %v47 = vpop.permute.xlu0 %46
    %50 = vset.pattern.permute.xlu0 0
    %51 = vperm.xlu0 %50, %v37
    %v52 = vpop.permute.xlu0 %51
    %55 = vset.pattern.permute.xlu0 0
    %56 = vperm.xlu0 %55, %v38
    %v57 = vpop.permute.xlu0 %56
    %vm59 = vcmask 130048
    %v61 = vsel %vm59, %v31, 0
    %v64 = vsel %vm59, %v32, 0
    %v67 = vsel %vm59, %v33, 0
    %v70 = vsel %vm59, %v34, 0
    %72 = vmatprep.subr.mxu0 0.0
    %73 = vmatpush1.msra.mxu0 %v29
    %74 = vmatprep.subr.mxu0 0.0
    %75 = vmatpush1.msra.mxu0 %v30
    %76 = vmatprep.subr.mxu0 0.0
    %77 = vmatpush1.msra.mxu0 0.0
    %78 = vmatprep.subr.mxu0 0.0
    %79 = vmatpush1.msra.mxu0 0.0
    %80 = vmatprep.subr.mxu0 0.0
    %81 = vmatpush1.msra.mxu0 0.0
    %82 = vmatprep.subr.mxu0 0.0
    %83 = vmatpush1.msra.mxu0 0.0
    %84 = vmatprep.subr.mxu0 0.0
    %85 = vmatpush1.msra.mxu0 0.0
    %86 = vmatprep.subr.mxu0 0.0
    %87 = vmatpush1.msra.mxu0 0.0
    %88 = vmatprep.subr.mxu0 0.0
    %89 = vmatpush1.msra.mxu0 0.0
    %90 = vmatprep.subr.mxu0 0.0
    %91 = vmatpush1.msra.mxu0 0.0
    %92 = vmatprep.subr.mxu0 0.0
    %93 = vmatpush1.msra.mxu0 0.0
    %94 = vmatprep.subr.mxu0 0.0
    %95 = vmatpush1.msra.mxu0 0.0
    %96 = vmatprep.subr.mxu0 0.0
    %97 = vmatpush1.msra.mxu0 0.0
    %98 = vmatprep.subr.mxu0 0.0
    %99 = vmatpush1.msra.mxu0 0.0
    %100 = vmatprep.subr.mxu0 0.0
    %101 = vmatpush1.msra.mxu0 0.0
    %102 = vmatprep.subr.mxu0 0.0
    %103 = vmatpush1.msra.mxu0 0.0
    %104 = vmatprep.subr.mxu0 0.0
    %105 = vmatpush1.msra.mxu0 0.0
    %106 = vmatprep.subr.mxu0 0.0
    %107 = vmatpush1.msra.mxu0 0.0
    %108 = vmatprep.subr.mxu0 0.0
    %109 = vmatpush1.msra.mxu0 0.0
    %110 = vmatprep.subr.mxu0 0.0
    %111 = vmatpush1.msra.mxu0 0.0
    %112 = vmatprep.subr.mxu0 0.0
    %113 = vmatpush1.msra.mxu0 0.0
    %114 = vmatprep.subr.mxu0 0.0
    %115 = vmatpush1.msra.mxu0 0.0
    %116 = vmatprep.subr.mxu0 0.0
    %117 = vmatpush1.msra.mxu0 0.0
    %118 = vmatprep.subr.mxu0 0.0
    %119 = vmatpush1.msra.mxu0 0.0
    %120 = vmatprep.subr.mxu0 0.0
    %121 = vmatpush1.msra.mxu0 0.0
    %122 = vmatprep.subr.mxu0 0.0
    %123 = vmatpush1.msra.mxu0 0.0
    %124 = vmatprep.subr.mxu0 0.0
    %125 = vmatpush1.msra.mxu0 0.0
    %126 = vmatprep.subr.mxu0 0.0
    %127 = vmatpush1.msra.mxu0 0.0
    %128 = vmatprep.subr.mxu0 0.0
    %129 = vmatpush1.msra.mxu0 0.0
    %130 = vmatprep.subr.mxu0 0.0
    %131 = vmatpush1.msra.mxu0 0.0
    %132 = vmatprep.subr.mxu0 0.0
    %133 = vmatpush1.msra.mxu0 0.0
    %134 = vmatprep.subr.mxu0 0.0
    %135 = vmatpush1.msra.mxu0 0.0
    %136 = vmatprep.mubr.f32.mxu0 0.0
    %137 = vmatmul.mubr.f32.gmra.mrb[0].mxu0 %v61
    %v138 = vpop.f32.mrb[0].mxu0
    %v139 = vadd.f32 %v42, %v138
    %v140 = vpop.f32.mrb[0].mxu0
    %141 = vmatprep.mubr.f32.mxu0 0.0
    %142 = vmatmul.mubr.f32.gmra.mrb[0].mxu0 %v64
    %v143 = vpop.f32.mrb[0].mxu0
    %v144 = vadd.f32 %v47, %v143
    %v145 = vpop.f32.mrb[0].mxu0
    %146 = vmatprep.mubr.f32.mxu0 0.0
    %147 = vmatmul.mubr.f32.gmra.mrb[0].mxu0 %v67
    %v148 = vpop.f32.mrb[0].mxu0
    %v149 = vadd.f32 %v52, %v148
    %v150 = vpop.f32.mrb[0].mxu0
    %151 = vmatprep.mubr.f32.mxu0 0.0
    %152 = vmatmul.mubr.f32.gmra.mrb[0].mxu0 %v70
    %v153 = vpop.f32.mrb[0].mxu0
    %v154 = vadd.f32 %v57, %v153
    %v155 = vpop.f32.mrb[0].mxu0
    %156 = vdwg.mxu0
    %v157 = vmax.f32 %v139, 0.0
    %v158 = vmax.f32 %v144, 0.0
    %v159 = vmax.f32 %v149, 0.0
    %v160 = vmax.f32 %v154, 0.0
    %v161 = vld [vmem:[%s3] sm:$0xff]
    %v162 = vld [vmem:[%s3 + $0x8] sm:$0xff]
    %v163 = vld [vmem:[%s3 + $0x10] sm:$0xff]
    %v164 = vld [vmem:[%s3 + $0x18] sm:$0xff]
    %v165 = vld [vmem:[%s4] sm:$0xff]
    %v166 = vld [vmem:[%s4 + $0x8] sm:$0xff]
    %v167 = vld [vmem:[%s4 + $0x10] sm:$0xff]
    %v168 = vld [vmem:[%s4 + $0x18] sm:$0xff]
    %170 = vset.pattern.permute.xlu0 0
    %171 = vperm.xlu0 %170, %v165
    %v172 = vpop.permute.xlu0 %171
    %175 = vset.pattern.permute.xlu0 0
    %176 = vperm.xlu0 %175, %v166
    %v177 = vpop.permute.xlu0 %176
    %180 = vset.pattern.permute.xlu0 0
    %181 = vperm.xlu0 %180, %v167
    %v182 = vpop.permute.xlu0 %181
    %185 = vset.pattern.permute.xlu0 0
    %186 = vperm.xlu0 %185, %v168
    %v187 = vpop.permute.xlu0 %186
    %vm189 = vcmask 261120
    %v191 = vsel %vm189, %v161, 0
    %v194 = vsel %vm189, %v162, 0
    %v197 = vsel %vm189, %v163, 0
    %v200 = vsel %vm189, %v164, 0
    %202 = vmatprep.subr.mxu0 0.0
    %203 = vmatpush1.msra.mxu0 %v157
    %204 = vmatprep.subr.mxu0 0.0
    %205 = vmatpush1.msra.mxu0 %v158
    %206 = vmatprep.subr.mxu0 0.0
    %207 = vmatpush1.msra.mxu0 %v159
    %208 = vmatprep.subr.mxu0 0.0
    %209 = vmatpush1.msra.mxu0 %v160
    %210 = vmatprep.subr.mxu0 0.0
    %211 = vmatpush1.msra.mxu0 0.0
    %212 = vmatprep.subr.mxu0 0.0
    %213 = vmatpush1.msra.mxu0 0.0
    %214 = vmatprep.subr.mxu0 0.0
    %215 = vmatpush1.msra.mxu0 0.0
    %216 = vmatprep.subr.mxu0 0.0
    %217 = vmatpush1.msra.mxu0 0.0
    %218 = vmatprep.subr.mxu0 0.0
    %219 = vmatpush1.msra.mxu0 0.0
    %220 = vmatprep.subr.mxu0 0.0
    %221 = vmatpush1.msra.mxu0 0.0
    %222 = vmatprep.subr.mxu0 0.0
    %223 = vmatpush1.msra.mxu0 0.0
    %224 = vmatprep.subr.mxu0 0.0
    %225 = vmatpush1.msra.mxu0 0.0
    %226 = vmatprep.subr.mxu0 0.0
    %227 = vmatpush1.msra.mxu0 0.0
    %228 = vmatprep.subr.mxu0 0.0
    %229 = vmatpush1.msra.mxu0 0.0
    %230 = vmatprep.subr.mxu0 0.0
    %231 = vmatpush1.msra.mxu0 0.0
    %232 = vmatprep.subr.mxu0 0.0
    %233 = vmatpush1.msra.mxu0 0.0
    %234 = vmatprep.subr.mxu0 0.0
    %235 = vmatpush1.msra.mxu0 0.0
    %236 = vmatprep.subr.mxu0 0.0
    %237 = vmatpush1.msra.mxu0 0.0
    %238 = vmatprep.subr.mxu0 0.0
    %239 = vmatpush1.msra.mxu0 0.0
    %240 = vmatprep.subr.mxu0 0.0
    %241 = vmatpush1.msra.mxu0 0.0
    %242 = vmatprep.subr.mxu0 0.0
    %243 = vmatpush1.msra.mxu0 0.0
    %244 = vmatprep.subr.mxu0 0.0
    %245 = vmatpush1.msra.mxu0 0.0
    %246 = vmatprep.subr.mxu0 0.0
    %247 = vmatpush1.msra.mxu0 0.0
    %248 = vmatprep.subr.mxu0 0.0
    %249 = vmatpush1.msra.mxu0 0.0
    %250 = vmatprep.subr.mxu0 0.0
    %251 = vmatpush1.msra.mxu0 0.0
    %252 = vmatprep.subr.mxu0 0.0
    %253 = vmatpush1.msra.mxu0 0.0
    %254 = vmatprep.subr.mxu0 0.0
    %255 = vmatpush1.msra.mxu0 0.0
    %256 = vmatprep.subr.mxu0 0.0
    %257 = vmatpush1.msra.mxu0 0.0
    %258 = vmatprep.subr.mxu0 0.0
    %259 = vmatpush1.msra.mxu0 0.0
    %260 = vmatprep.subr.mxu0 0.0
    %261 = vmatpush1.msra.mxu0 0.0
    %262 = vmatprep.subr.mxu0 0.0
    %263 = vmatpush1.msra.mxu0 0.0
    %264 = vmatprep.subr.mxu0 0.0
    %265 = vmatpush1.msra.mxu0 0.0
    %266 = vmatprep.mubr.f32.mxu0 0.0
    %267 = vmatmul.mubr.f32.gmra.mrb[0].mxu0 %v191
    %v268 = vpop.f32.mrb[0].mxu0
    %v269 = vadd.f32 %v172, %v268
    %v270 = vpop.f32.mrb[0].mxu0
    %271 = vmatprep.mubr.f32.mxu0 0.0
    %272 = vmatmul.mubr.f32.gmra.mrb[0].mxu0 %v194
    %v273 = vpop.f32.mrb[0].mxu0
    %v274 = vadd.f32 %v177, %v273
    %v275 = vpop.f32.mrb[0].mxu0
    %276 = vmatprep.mubr.f32.mxu0 0.0
    %277 = vmatmul.mubr.f32.gmra.mrb[0].mxu0 %v197
    %v278 = vpop.f32.mrb[0].mxu0
    %v279 = vadd.f32 %v182, %v278
    %v280 = vpop.f32.mrb[0].mxu0
    %281 = vmatprep.mubr.f32.mxu0 0.0
    %282 = vmatmul.mubr.f32.gmra.mrb[0].mxu0 %v200
    %v283 = vpop.f32.mrb[0].mxu0
    %v284 = vadd.f32 %v187, %v283
    %v285 = vpop.f32.mrb[0].mxu0
    %286 = vdwg.mxu0
    %v287 = vmax.f32 %v269, 0.0
    %v288 = vmax.f32 %v274, 0.0
    %v289 = vmax.f32 %v279, 0.0
    %v290 = vmax.f32 %v284, 0.0
    %v291 = vld [vmem:[%s5] sm:$0xff]
    %v292 = vld [vmem:[%s5 + $0x8] sm:$0xff]
    %v293 = vld [vmem:[%s5 + $0x10] sm:$0xff]
    %v294 = vld [vmem:[%s5 + $0x18] sm:$0xff]
    %v295 = vld [vmem:[#allocation2] sm:$0x1]
    %297 = vset.pattern.permute.xlu0 0
    %298 = vperm.xlu0 %297, %v291
    %v299 = vpop.permute.xlu0 %298
    %302 = vset.pattern.permute.xlu0 0
    %303 = vperm.xlu0 %302, %v292
    %v304 = vpop.permute.xlu0 %303
    %307 = vset.pattern.permute.xlu0 0
    %308 = vperm.xlu0 %307, %v293
    %v309 = vpop.permute.xlu0 %308
    %312 = vset.pattern.permute.xlu0 0
    %313 = vperm.xlu0 %312, %v294
    %v314 = vpop.permute.xlu0 %313
    %v316 = vmul.f32 %v287, %v299
    %v317 = vmul.f32 %v288, %v304
    %v318 = vmul.f32 %v289, %v309
    %v319 = vmul.f32 %v290, %v314
    %v320 = vadd.f32 %v316, %v317
    %v321 = vadd.f32 %v320, %v318
    %v322 = vadd.f32 %v321, %v319
    %v323 = vrot.slane %v322, 4
    %v324 = vadd.f32 %v322, %v323
    %v325 = vrot.slane %v324, 2
    %v326 = vadd.f32 %v324, %v325
    %v327 = vrot.slane %v326, 1
    %v328 = vadd.f32 %v326, %v327
    %330 = vset.pattern.permute.xlu0 0
    %331 = vperm.xlu0 %330, %v295
    %v332 = vpop.permute.xlu0 %331
    %v334 = vlaneseq
    %v335 = vshrl.u32 %v334, 7
    %v336 = vsub.s32 0, %v335
    %v337 = vrot.slane %v332, %v336
    %v338 = vadd.f32 %v328, %v337
    %339 = vst [vmem:[#allocation3] sm:$0x1] %v338
    // Predicated region
    $region30: #{tpu_custom_call.1} parent=1 // pred_check
      _
    $region31: #{tpu_custom_call.1} parent=1 // pred_check_branch
      %341 = sbr.rel (0) target = $region33
    $region32: #{tpu_custom_call.1} parent=1 // pred_region
      %s343 = ssub.s32 16, 16
      %344 = vsyncadd [#allocation4], %s343
      %s346 = sshll.u32 [#allocation3], 4
      %s347 = int_to_ptr.vmem [resolvable:$true] %s346
      %349 = dma.vmem_to_hbm [thread:$0]  %s347, 16, %s7, [#allocation4]
    $region33: #{tpu_custom_call.1} parent=1 // pred_fallthru
      _
    // Predicated region
    $region34: #{tpu_custom_call.1} parent=1 // pred_check
      _
    $region35: #{tpu_custom_call.1} parent=1 // pred_check_branch
      %351 = sbr.rel (0) target = $region37
    $region36: #{tpu_custom_call.1} parent=1 // pred_region
      %352 = dma.done [#allocation4], 16
    $region37: #{tpu_custom_call.1} parent=1 // pred_fallthru
      _
    %353 = vsyncpa [#allocation4], 1

</llo_original>
